<compile_context>
chip_gen: v5e
topology: v5e:2x2
jax: 0.10.0
libtpu: 0.0.40
codegen_flags: <defaults>
</compile_context>

<pallas_src>
import functools

import jax
import jax.numpy as jnp
from jax.experimental import pallas as pl
from jax.experimental.pallas import tpu as pltpu

LN_EPS = 1e-5  # torch.nn.LayerNorm default


def _round_up(n, m):
    return ((n + m - 1) // m) * m


def _tpu_vmem_and_cores():
    """Per-TensorCore VMEM capacity and (heuristic) TensorCore count per chip."""
    cap = 64 * 1024 * 1024  # conservative default (v7x-sized), works everywhere
    try:
        info = pltpu.get_tpu_info()
        cap = int(getattr(info, "vmem_capacity_bytes", cap))
    except Exception:
        pass
    # 64 MiB/TC parts (v7x) have 2 TensorCores per chip; 128 MiB parts have 1.
    cores = 2 if cap <= 80 * 1024 * 1024 else 1
    return cap, cores


def _pick_tm(m8, tm_max):
    """Row tile minimizing padded rows (bounded padding waste), prefer larger."""
    cands = [c for c in (512, 256, 128, 64, 32, 16, 8) if c <= min(tm_max, m8)]
    if not cands:
        return 8
    return min(cands, key=lambda tm: (_round_up(m8, tm), -tm))


def _layer_norm_epilogue(y, ln, *, inv_d_model, d_model, dm_p):
    """y: (tm, dm_p) f32 with padded lanes exactly zero; ln: (3, dm_p) f32 =
    [b2, gamma, beta] (b2 already added to y upstream)."""
    mean = jnp.sum(y, axis=-1, keepdims=True) * inv_d_model
    yc = y - mean
    if dm_p != d_model:
        # Centered padded lanes would be -mean; mask so the two-pass variance
        # only sees the real d_model columns.
        col = jax.lax.broadcasted_iota(jnp.int32, y.shape, y.ndim - 1)
        yc = jnp.where(col < d_model, yc, 0.0)
    var = jnp.sum(yc * yc, axis=-1, keepdims=True) * inv_d_model
    # gamma folded into the EUP rsqrt scale (one fewer full-width VPU multiply).
    scale = jax.lax.rsqrt(var + LN_EPS) * ln[1:2, :]
    return yc * scale + ln[2:3, :]


def _ffn_resident_kernel(x_ref, w1_ref, b1_ref, w2_ref, ln_ref, o_ref, *,
                         inv_d_model, d_model, dm_p):
    x = x_ref[...]
    h = jnp.dot(x, w1_ref[...], preferred_element_type=jnp.float32)
    h = jnp.maximum(h + b1_ref[...], 0.0)
    y = jnp.dot(h.astype(w2_ref.dtype), w2_ref[...],
                preferred_element_type=jnp.float32)
    ln = ln_ref[...]
    # bias + dropout(identity, eval) + residual, all in f32.
    y = y + ln[0:1, :] + x.astype(jnp.float32)
    o_ref[...] = _layer_norm_epilogue(
        y, ln, inv_d_model=inv_d_model, d_model=d_model, dm_p=dm_p
    ).astype(o_ref.dtype)


def _ffn_streamed_kernel(x_ref, w1_ref, b1_ref, w2_ref, ln_ref, o_ref, acc_ref, *,
                         inv_d_model, d_model, dm_p):
    k = pl.program_id(1)

    @pl.when(k == 0)
    def _():
        acc_ref[...] = jnp.zeros_like(acc_ref)

    # First matmul over one d_ff chunk: (tm, dm) @ (dm, tf), f32 MXU accumulate.
    h = jnp.dot(x_ref[...], w1_ref[...], preferred_element_type=jnp.float32)
    h = jnp.maximum(h + b1_ref[...], 0.0)
    # Second matmul chunk, accumulated across the d_ff grid axis.
    acc_ref[...] += jnp.dot(h.astype(w2_ref.dtype), w2_ref[...],
                            preferred_element_type=jnp.float32)

    @pl.when(k == pl.num_programs(1) - 1)
    def _():
        ln = ln_ref[...]
        y = acc_ref[...] + ln[0:1, :] + x_ref[...].astype(jnp.float32)
        o_ref[...] = _layer_norm_epilogue(
            y, ln, inv_d_model=inv_d_model, d_model=d_model, dm_p=dm_p
        ).astype(o_ref.dtype)


def positionwise_feed_forward(x, w1, b1, w2, b2, gamma, beta, *,
                              compute_dtype=None, tm_max=512, tf_max=None,
                              force_streamed=False):
    """x: [B, S, d_model] -> [B, S, d_model].

    Weights are [in, out] (already transposed vs torch.nn.Linear.weight).
    `compute_dtype=jnp.bfloat16` feeds the MXU in bf16 (f32 accumulate) for
    higher throughput when numerics allow; default keeps the input dtype.
    """
    B, S, d_model = x.shape
    d_ff = w1.shape[1]
    M = B * S
    M8 = _round_up(M, 8)

    cdt = jnp.dtype(x.dtype if compute_dtype is None else compute_dtype)
    xbytes = cdt.itemsize
    wbytes = cdt.itemsize
    obytes = jnp.dtype(x.dtype).itemsize

    dm_p = _round_up(d_model, 128)
    dff128 = _round_up(d_ff, 128)

    vmem_cap, num_cores = _tpu_vmem_and_cores()
    # ~107 MiB on 128-MiB parts (v5e/v6e), ~53 MiB on 64-MiB parts (v7x).
    vmem_limit = max(32 * 1024 * 1024, int(vmem_cap * 0.84))
    budget = max(16 * 1024 * 1024, vmem_limit - 6 * 1024 * 1024)

    # --- Row tile: minimize padding waste; keep >=2 tiles on dual-TC parts.
    tm = _pick_tm(M8, tm_max)
    M_p = _round_up(M8, tm)
    if num_cores >= 2 and (M_p // tm) < 2 and tm >= 16:
        tm //= 2
        M_p = _round_up(M8, tm)

    def resident_bytes(tm_):
        w = 2 * 2 * dm_p * dff128 * wbytes            # w1+w2, double-buffer factor
        xo = 2 * tm_ * dm_p * (xbytes + obytes)       # double-buffered x / out tiles
        h = tm_ * dff128 * (4 + wbytes)               # f32 h + cast copy for 2nd dot
        yb = 2 * tm_ * dm_p * 4                       # f32 epilogue temporaries
        small = 2 * 8 * (dff128 + dm_p) * 4           # b1 + (b2,gamma,beta) rows
        return w + xo + h + yb + small

    def streamed_bytes(tm_, tf_):
        w = 2 * 2 * dm_p * tf_ * wbytes               # w1/w2 chunks, double-buffered
        xo = 2 * tm_ * dm_p * (xbytes + obytes)
        acc = tm_ * dm_p * 4
        h = tm_ * tf_ * (4 + wbytes)
        yb = 2 * tm_ * dm_p * 4
        small = 2 * 8 * (tf_ + dm_p) * 4
        return w + xo + acc + h + yb + small

    use_resident = (not force_streamed) and resident_bytes(tm) <= budget

    if use_resident:
        dff_p = dff128
        tf = dff_p
    else:
        tf_cap = dff128 if tf_max is None else min(_round_up(tf_max, 128), dff128)
        tf = None
        for cand in (2048, 1024, 512, 256, 128):
            c = min(cand, tf_cap)
            if streamed_bytes(tm, c) <= budget:
                tf = c
                break
        if tf is None:
            tf = min(128, tf_cap)
            while tm > 8 and streamed_bytes(tm, tf) > budget:
                tm = max(8, tm // 2)
            M_p = _round_up(M8, tm)
        dff_p = _round_up(d_ff, tf)

    # --- Padded, lane/sublane-dense operands.  Padding is exact: padded weight
    # rows/cols, biases, gamma, beta are zero, and LayerNorm stats use the real
    # 1/d_model, so real output columns are untouched (padding sliced off).
    x2d = jnp.pad(x.reshape(M, d_model),
                  ((0, M_p - M), (0, dm_p - d_model))).astype(cdt)
    w1p = jnp.pad(w1, ((0, dm_p - d_model), (0, dff_p - d_ff))).astype(cdt)
    b1p = jnp.pad(b1, (0, dff_p - d_ff)).reshape(1, dff_p).astype(jnp.float32)
    w2p = jnp.pad(w2, ((0, dff_p - d_ff), (0, dm_p - d_model))).astype(cdt)
    lnp = jnp.stack([
        jnp.pad(b2, (0, dm_p - d_model)),
        jnp.pad(gamma, (0, dm_p - d_model)),
        jnp.pad(beta, (0, dm_p - d_model)),
    ]).astype(jnp.float32)                            # (3, dm_p): b2 / gamma / beta

    flops = int(4 * M_p * dm_p * dff_p)
    n_row_tiles = M_p // tm

    if use_resident:
        bytes_accessed = int(M_p * dm_p * (xbytes + obytes)
                             + 2 * dm_p * dff_p * wbytes
                             + (dff_p + 3 * dm_p) * 4)
        out2d = pl.pallas_call(
            functools.partial(_ffn_resident_kernel,
                              inv_d_model=1.0 / float(d_model),
                              d_model=d_model, dm_p=dm_p),
            out_shape=jax.ShapeDtypeStruct((M_p, dm_p), x.dtype),
            grid_spec=pltpu.PrefetchScalarGridSpec(
                num_scalar_prefetch=0,
                grid=(n_row_tiles,),
                in_specs=[
                    pl.BlockSpec((tm, dm_p), lambda i: (i, 0)),      # x row tile
                    pl.BlockSpec((dm_p, dff_p), lambda i: (0, 0)),   # w1 resident
                    pl.BlockSpec((1, dff_p), lambda i: (0, 0)),      # b1 resident
                    pl.BlockSpec((dff_p, dm_p), lambda i: (0, 0)),   # w2 resident
                    pl.BlockSpec((3, dm_p), lambda i: (0, 0)),       # b2/gamma/beta
                ],
                out_specs=pl.BlockSpec((tm, dm_p), lambda i: (i, 0)),
                scratch_shapes=[],
            ),
            compiler_params=pltpu.CompilerParams(
                dimension_semantics=("parallel",),
                vmem_limit_bytes=vmem_limit),
            cost_estimate=pl.CostEstimate(flops=flops, transcendentals=int(M_p),
                                          bytes_accessed=bytes_accessed),
        )(x2d, w1p, b1p, w2p, lnp)
    else:
        bytes_accessed = int(M_p * dm_p * (xbytes + obytes)
                             + n_row_tiles * 2 * dm_p * dff_p * wbytes
                             + n_row_tiles * (dff_p + 3 * dm_p) * 4)
        out2d = pl.pallas_call(
            functools.partial(_ffn_streamed_kernel,
                              inv_d_model=1.0 / float(d_model),
                              d_model=d_model, dm_p=dm_p),
            out_shape=jax.ShapeDtypeStruct((M_p, dm_p), x.dtype),
            grid_spec=pltpu.PrefetchScalarGridSpec(
                num_scalar_prefetch=0,
                grid=(n_row_tiles, dff_p // tf),       # reduction axis last
                in_specs=[
                    pl.BlockSpec((tm, dm_p), lambda i, k: (i, 0)),   # x (k-resident)
                    pl.BlockSpec((dm_p, tf), lambda i, k: (0, k)),   # w1 chunk
                    pl.BlockSpec((1, tf), lambda i, k: (0, k)),      # b1 chunk
                    pl.BlockSpec((tf, dm_p), lambda i, k: (k, 0)),   # w2 chunk
                    pl.BlockSpec((3, dm_p), lambda i, k: (0, 0)),    # b2/gamma/beta
                ],
                out_specs=pl.BlockSpec((tm, dm_p), lambda i, k: (i, 0)),
                scratch_shapes=[pltpu.VMEM((tm, dm_p), jnp.float32)],
            ),
            compiler_params=pltpu.CompilerParams(
                dimension_semantics=("parallel", "arbitrary"),
                vmem_limit_bytes=vmem_limit),
            cost_estimate=pl.CostEstimate(flops=flops, transcendentals=int(M_p),
                                          bytes_accessed=bytes_accessed),
        )(x2d, w1p, b1p, w2p, lnp)

    return out2d[:M, :d_model].reshape(B, S, d_model)


def reference(x, w1, b1, w2, b2, gamma, beta):
    h = jnp.maximum(x @ w1 + b1, 0.0)
    out = h @ w2 + b2
    y = out + x
    mean = jnp.mean(y, axis=-1, keepdims=True)
    var = jnp.mean((y - mean) ** 2, axis=-1, keepdims=True)
    return (y - mean) / jnp.sqrt(var + LN_EPS) * gamma + beta


def _run_case(key, batch, seq, d_model, d_ff, **kw):
    kx, k1, k2, k3, k4 = jax.random.split(key, 5)
    x = jax.random.normal(kx, (batch, seq, d_model), dtype=jnp.float32)
    w1 = jax.random.normal(k1, (d_model, d_ff), dtype=jnp.float32) / jnp.sqrt(d_model)
    b1 = jax.random.normal(k2, (d_ff,), dtype=jnp.float32) * 0.01
    w2 = jax.random.normal(k3, (d_ff, d_model), dtype=jnp.float32) / jnp.sqrt(d_ff)
    b2 = jax.random.normal(k4, (d_model,), dtype=jnp.float32) * 0.01
    gamma = jnp.ones((d_model,), dtype=jnp.float32)
    beta = jnp.zeros((d_model,), dtype=jnp.float32)

    out = positionwise_feed_forward(x, w1, b1, w2, b2, gamma, beta, **kw)
    out = jax.block_until_ready(out)
    ref = reference(x, w1, b1, w2, b2, gamma, beta)
    assert out.shape == x.shape
    assert jnp.allclose(out, ref, atol=1e-4, rtol=1e-4), "mismatch vs reference"


if __name__ == "__main__":
    key = jax.random.PRNGKey(0)
    k_a, k_b, k_c = jax.random.split(key, 3)

    # Small shapes consistent with the module (resident-weight path).
    _run_case(k_a, batch=2, seq=8, d_model=32, d_ff=64)
    # Ragged shapes exercising the M / d_model / d_ff padding + lane mask.
    _run_case(k_b, batch=3, seq=5, d_model=48, d_ff=96)
    # Force the streamed/accumulating path with multiple d_ff chunks.
    _run_case(k_c, batch=2, seq=16, d_model=128, d_ff=384,
              force_streamed=True, tf_max=128)

    print("KERNEL_OK")
</pallas_src>

<mosaic_0001>
module attributes {stable_mosaic.version = 11 : i64} {
  func.func @_ffn_resident_kernel(%arg0: i32, %arg1: memref<8x128xf32, #tpu.memory_space<vmem>>, %arg2: memref<128x128xf32, #tpu.memory_space<vmem>>, %arg3: memref<1x128xf32, #tpu.memory_space<vmem>>, %arg4: memref<128x128xf32, #tpu.memory_space<vmem>>, %arg5: memref<3x128xf32, #tpu.memory_space<vmem>>, %arg6: memref<8x128xf32, #tpu.memory_space<vmem>>) attributes {dimension_semantics = [#tpu.dimension_semantics<parallel>], iteration_bounds = array<i64: 2>, scalar_prefetch = 0 : i64, scratch_operands = 0 : i64, tpu.core_type = #tpu.core_type<tc>, window_params = [{transform_indices = @transform_0, window_bounds = array<i64: 8, 128>}, {pipeline_mode = #tpu.pipeline_mode<synchronous>, transform_indices = @transform_1, window_bounds = array<i64: 128, 128>}, {pipeline_mode = #tpu.pipeline_mode<synchronous>, transform_indices = @transform_2, window_bounds = array<i64: 1, 128>}, {pipeline_mode = #tpu.pipeline_mode<synchronous>, transform_indices = @transform_3, window_bounds = array<i64: 128, 128>}, {pipeline_mode = #tpu.pipeline_mode<synchronous>, transform_indices = @transform_4, window_bounds = array<i64: 3, 128>}, {transform_indices = @transform_5, window_bounds = array<i64: 8, 128>}]} {
    %c0 = arith.constant 0 : index
    %c0_0 = arith.constant 0 : index
    %0 = vector.load %arg1[%c0, %c0_0] : memref<8x128xf32, #tpu.memory_space<vmem>>, vector<8x128xf32>
    %c0_1 = arith.constant 0 : index
    %c0_2 = arith.constant 0 : index
    %1 = vector.load %arg2[%c0_1, %c0_2] : memref<128x128xf32, #tpu.memory_space<vmem>>, vector<128x128xf32>
    %cst = arith.constant dense<0.000000e+00> : vector<8x128xf32>
    %2 = tpu.matmul %0, %1, %cst {dimension_numbers = #tpu.dot_dimension_numbers<[1], [0], [0], [1], [0, 0, 1, 1], [], []>} : vector<8x128xf32>, vector<128x128xf32>, vector<8x128xf32> -> vector<8x128xf32>
    %c0_3 = arith.constant 0 : index
    %c0_4 = arith.constant 0 : index
    %3 = vector.load %arg3[%c0_3, %c0_4] : memref<1x128xf32, #tpu.memory_space<vmem>>, vector<1x128xf32>
    %4 = vector.broadcast %3 : vector<1x128xf32> to vector<8x128xf32>
    %5 = arith.addf %2, %4 : vector<8x128xf32>
    %cst_5 = arith.constant 0.000000e+00 : f32
    %6 = vector.broadcast %cst_5 : f32 to vector<8x128xf32>
    %7 = arith.maximumf %5, %6 : vector<8x128xf32>
    %c0_6 = arith.constant 0 : index
    %c0_7 = arith.constant 0 : index
    %8 = vector.load %arg4[%c0_6, %c0_7] : memref<128x128xf32, #tpu.memory_space<vmem>>, vector<128x128xf32>
    %cst_8 = arith.constant dense<0.000000e+00> : vector<8x128xf32>
    %9 = tpu.matmul %7, %8, %cst_8 {dimension_numbers = #tpu.dot_dimension_numbers<[1], [0], [0], [1], [0, 0, 1, 1], [], []>} : vector<8x128xf32>, vector<128x128xf32>, vector<8x128xf32> -> vector<8x128xf32>
    %c0_9 = arith.constant 0 : index
    %c0_10 = arith.constant 0 : index
    %10 = vector.load %arg5[%c0_9, %c0_10] : memref<3x128xf32, #tpu.memory_space<vmem>>, vector<3x128xf32>
    %11 = vector.extract_strided_slice %10 {offsets = [0, 0], sizes = [1, 128], strides = [1, 1]} : vector<3x128xf32> to vector<1x128xf32>
    %12 = vector.broadcast %11 : vector<1x128xf32> to vector<8x128xf32>
    %13 = arith.addf %9, %12 : vector<8x128xf32>
    %14 = arith.addf %13, %0 : vector<8x128xf32>
    %cst_11 = arith.constant dense<0.000000e+00> : vector<8xf32>
    %15 = vector.multi_reduction <add>, %14, %cst_11 [1] : vector<8x128xf32> to vector<8xf32>
    %16 = vector.shape_cast %15 : vector<8xf32> to vector<8x1xf32>
    %cst_12 = arith.constant 3.125000e-02 : f32
    %17 = vector.broadcast %cst_12 : f32 to vector<8x1xf32>
    %18 = arith.mulf %16, %17 : vector<8x1xf32>
    %19 = vector.broadcast %18 : vector<8x1xf32> to vector<8x128xf32>
    %20 = arith.subf %14, %19 : vector<8x128xf32>
    %21 = tpu.iota {dimensions = array<i32: 1>} : vector<8x128xi32>
    %c32_i32 = arith.constant 32 : i32
    %22 = vector.broadcast %c32_i32 : i32 to vector<8x128xi32>
    %23 = arith.cmpi slt, %21, %22 : vector<8x128xi32>
    %cst_13 = arith.constant 0.000000e+00 : f32
    %24 = vector.broadcast %cst_13 : f32 to vector<8x128xf32>
    %25 = arith.select %23, %20, %24 : vector<8x128xi1>, vector<8x128xf32>
    %26 = arith.mulf %25, %25 : vector<8x128xf32>
    %cst_14 = arith.constant dense<0.000000e+00> : vector<8xf32>
    %27 = vector.multi_reduction <add>, %26, %cst_14 [1] : vector<8x128xf32> to vector<8xf32>
    %28 = vector.shape_cast %27 : vector<8xf32> to vector<8x1xf32>
    %cst_15 = arith.constant 3.125000e-02 : f32
    %29 = vector.broadcast %cst_15 : f32 to vector<8x1xf32>
    %30 = arith.mulf %28, %29 : vector<8x1xf32>
    %cst_16 = arith.constant 9.99999974E-6 : f32
    %31 = vector.broadcast %cst_16 : f32 to vector<8x1xf32>
    %32 = arith.addf %30, %31 : vector<8x1xf32>
    %33 = math.rsqrt %32 : vector<8x1xf32>
    %34 = vector.extract_strided_slice %10 {offsets = [1, 0], sizes = [1, 128], strides = [1, 1]} : vector<3x128xf32> to vector<1x128xf32>
    %35 = vector.broadcast %33 : vector<8x1xf32> to vector<8x128xf32>
    %36 = vector.broadcast %34 : vector<1x128xf32> to vector<8x128xf32>
    %37 = arith.mulf %35, %36 : vector<8x128xf32>
    %38 = arith.mulf %25, %37 : vector<8x128xf32>
    %39 = vector.extract_strided_slice %10 {offsets = [2, 0], sizes = [1, 128], strides = [1, 1]} : vector<3x128xf32> to vector<1x128xf32>
    %40 = vector.broadcast %39 : vector<1x128xf32> to vector<8x128xf32>
    %41 = arith.addf %38, %40 : vector<8x128xf32>
    %c0_17 = arith.constant 0 : index
    %c0_18 = arith.constant 0 : index
    %42 = vector.load %arg6[%c0_17, %c0_18] : memref<8x128xf32, #tpu.memory_space<vmem>>, vector<8x128xf32>
    tpu.vector_store %arg6[%c0_17, %c0_18], %41 {strides = array<i32>} : memref<8x128xf32, #tpu.memory_space<vmem>>, vector<8x128xf32>,
    return
  }
  func.func @transform_0(%arg0: i32) -> (i32, i32) {
    %c0_i32 = arith.constant 0 : i32
    %c0_i32_0 = arith.constant 0 : i32
    return %arg0, %c0_i32 : i32, i32
  }
  func.func @transform_1(%arg0: i32) -> (i32, i32) {
    %c0_i32 = arith.constant 0 : i32
    %c0_i32_0 = arith.constant 0 : i32
    %c0_i32_1 = arith.constant 0 : i32
    return %c0_i32, %c0_i32_0 : i32, i32
  }
  func.func @transform_2(%arg0: i32) -> (i32, i32) {
    %c0_i32 = arith.constant 0 : i32
    %c0_i32_0 = arith.constant 0 : i32
    %c0_i32_1 = arith.constant 0 : i32
    return %c0_i32, %c0_i32_0 : i32, i32
  }
  func.func @transform_3(%arg0: i32) -> (i32, i32) {
    %c0_i32 = arith.constant 0 : i32
    %c0_i32_0 = arith.constant 0 : i32
    %c0_i32_1 = arith.constant 0 : i32
    return %c0_i32, %c0_i32_0 : i32, i32
  }
  func.func @transform_4(%arg0: i32) -> (i32, i32) {
    %c0_i32 = arith.constant 0 : i32
    %c0_i32_0 = arith.constant 0 : i32
    %c0_i32_1 = arith.constant 0 : i32
    return %c0_i32, %c0_i32_0 : i32, i32
  }
  func.func @transform_5(%arg0: i32) -> (i32, i32) {
    %c0_i32 = arith.constant 0 : i32
    %c0_i32_0 = arith.constant 0 : i32
    return %arg0, %c0_i32 : i32, i32
  }
}

</mosaic_0001>

<llo_original>
// kernel: tpu_custom_call.1
$region0: #{tpu_custom_call.1}
  #allocation0 [shape = 'u32[]', space=smem, size = 0x4, offset = 0x4, fixed_abs, tag = 'smem constant byte address 0x4 - core index']
  #allocation1 [shape = 'u32[72,128]{1,0:T(1,128)}', space=vmem, size = 0x9000, scoped, tag = 'internal scratch']
  %s0 = inlined_call_operand.hbm [shape: f32[16,128], index: 0, kind: input, shape index: {}]
  %s1 = inlined_call_operand.hbm [shape: f32[128,128], index: 1, kind: input, shape index: {}]
  %s2 = inlined_call_operand.vmem [shape: f32[1,128], index: 2, kind: input, shape index: {}]
  %s3 = inlined_call_operand.hbm [shape: f32[128,128], index: 3, kind: input, shape index: {}]
  %s4 = inlined_call_operand.hbm [shape: f32[3,128], index: 4, kind: input, shape index: {}]
  %s5 = inlined_call_operand.hbm [shape: f32[16,128], index: 5, kind: output, shape index: {}]
  %s6 = sld [smem:[#allocation0]]
  $region69: #{tpu_custom_call.1} parent=0
    _
  %s8 = ssub.s32 1, %s6
  %s9 = scalar_select 0, %s8, %s6
  $region1: #{tpu_custom_call.1} parent=0
    #allocation2 [shape = 'u8[8192]{0}', space=vmem, size = 0x2000, scoped, tag = 'input window, operand 0']
    #allocation3 [shape = 's32[2]{0}', space=sflag, size = 0x8, scoped, tag = 'scoped memory for tpu_custom_call.1']
    #allocation4 [shape = 's32[2]{0}', space=sflag, size = 0x8, scoped, tag = 'scoped memory for tpu_custom_call.1']
    #allocation5 [shape = 'u8[65536]{0}', space=vmem, size = 0x10000, scoped, tag = 'input window, operand 1, single buffered']
    #allocation6 [shape = 's32[1]{0}', space=sflag, size = 0x4, scoped, tag = 'scoped memory for tpu_custom_call.1']
    #allocation7 [shape = 'u8[65536]{0}', space=vmem, size = 0x10000, scoped, tag = 'input window, operand 3, single buffered']
    #allocation8 [shape = 'u8[2048]{0}', space=vmem, size = 0x800, scoped, tag = 'input window, operand 4, single buffered']
    #allocation9 [shape = 's32[1]{0}', space=sflag, size = 0x4, scoped, tag = 'scoped memory for tpu_custom_call.1']
    #allocation10 [shape = 'u8[8192]{0}', space=vmem, size = 0x2000, scoped, tag = 'output window, operand 0']
    %10 = vsyncpa [#allocation3], 0
    %s11 = scalar_lea.sflag [#allocation3], 1
    %12 = vsyncpa %s11, 0
    %13 = vsyncpa [#allocation6], 0
    %14 = vsyncpa [#allocation9], 0
    %15 = vsyncpa [#allocation4], 0
    %s16 = scalar_lea.sflag [#allocation4], 1
    %17 = vsyncpa %s16, 0
    loop: start=0, step=1, limit=4
    $region2: #{tpu_custom_call.1} parent=1 // loop_pre_header
      _
    $region3: #{tpu_custom_call.1} parent=1 // loop_header
      %s19 = sphi 0, %s23
      %p20 = scmp.ge.s32.totalorder %s19, 4
      %s29 = sphi 0, %s31
      %s32 = sphi 0, %s29
      %s33 = sphi 0, %s32
      %s49 = sphi 0, %s33
      %s53 = sphi 0, %s53
      %s55 = sphi 0, %s53
      %s56 = sphi 0, %s55
      %s70 = sphi 0, %s56
      %s74 = sphi 0, %s74
      %s76 = sphi 0, %s74
      %s77 = sphi 0, %s76
      %s91 = sphi 0, %s77
      %s95 = sphi 0, %s95
      %s97 = sphi 0, %s95
      %s98 = sphi 0, %s97
      %s112 = sphi 0, %s98
      %s116 = sphi 0, %s116
      %s118 = sphi 0, %s116
      %s119 = sphi 0, %s118
      %s133 = sphi 0, %s119
      %s139 = sphi 0, %s141
      %s142 = sphi 0, %s139
      %s143 = sphi 0, %s142
      %s159 = sphi 0, %s143
    $region4: #{tpu_custom_call.1} parent=1 // loop_header_branch
      %22 = sbr.rel (%p20) target = $region8
    $region5: #{tpu_custom_call.1} parent=1 // loop_body
      %s24 = ssub.s32 %s19, 1
      %s25 = ssub.s32 %s19, 2
      %s26 = sadd.s32 %s19, 1
      %s27 = ssub.s32 %s19, %s26
      %p28 = scmp.eq.s32.totalorder %s27, 0
      %s30 = sadd.s32 %s29, 1
      %s31 = scalar_select %p28, %s29, %s30
      %p34 = pneg %p28
      %p35 = scmp.eq.s32.totalorder %s19, 1
      %p36 = por %p34, %p35
      %p37 = scmp.ne.s32.totalorder %s29, %s32
      %p38 = scmp.eq.s32.totalorder %s19, 0
      %p39 = por %p37, %p38
      %p40 = scmp.ne.s32.totalorder %s29, %s32
      %p41 = scmp.eq.s32.totalorder %s24, 1
      %p42 = por %p40, %p41
      %p43 = scmp.ne.s32.totalorder %s32, %s33
      %p44 = scmp.eq.s32.totalorder %s24, 0
      %p45 = por %p43, %p44
      %p46 = scmp.ne.s32.totalorder %s32, %s33
      %p47 = scmp.eq.s32.totalorder %s25, 1
      %p48 = por %p46, %p47
      %p50 = scmp.ne.s32.totalorder %s33, %s49
      %p51 = scmp.eq.s32.totalorder %s25, 0
      %p52 = por %p50, %p51
      %s54 = sadd.s32 %s53, 1
      %p57 = scmp.eq.s32.totalorder %s19, 1
      %p58 = scmp.ne.s32.totalorder %s53, %s55
      %p59 = scmp.eq.s32.totalorder %s19, 0
      %p60 = por %p58, %p59
      %p61 = scmp.ne.s32.totalorder %s53, %s55
      %p62 = scmp.eq.s32.totalorder %s24, 1
      %p63 = por %p61, %p62
      %p64 = scmp.ne.s32.totalorder %s55, %s56
      %p65 = scmp.eq.s32.totalorder %s24, 0
      %p66 = por %p64, %p65
      %p67 = scmp.ne.s32.totalorder %s55, %s56
      %p68 = scmp.eq.s32.totalorder %s25, 1
      %p69 = por %p67, %p68
      %p71 = scmp.ne.s32.totalorder %s56, %s70
      %p72 = scmp.eq.s32.totalorder %s25, 0
      %p73 = por %p71, %p72
      %s75 = sadd.s32 %s74, 1
      %p78 = scmp.eq.s32.totalorder %s19, 1
      %p79 = scmp.ne.s32.totalorder %s74, %s76
      %p80 = scmp.eq.s32.totalorder %s19, 0
      %p81 = por %p79, %p80
      %p82 = scmp.ne.s32.totalorder %s74, %s76
      %p83 = scmp.eq.s32.totalorder %s24, 1
      %p84 = por %p82, %p83
      %p85 = scmp.ne.s32.totalorder %s76, %s77
      %p86 = scmp.eq.s32.totalorder %s24, 0
      %p87 = por %p85, %p86
      %p88 = scmp.ne.s32.totalorder %s76, %s77
      %p89 = scmp.eq.s32.totalorder %s25, 1
      %p90 = por %p88, %p89
      %p92 = scmp.ne.s32.totalorder %s77, %s91
      %p93 = scmp.eq.s32.totalorder %s25, 0
      %p94 = por %p92, %p93
      %s96 = sadd.s32 %s95, 1
      %p99 = scmp.eq.s32.totalorder %s19, 1
      %p100 = scmp.ne.s32.totalorder %s95, %s97
      %p101 = scmp.eq.s32.totalorder %s19, 0
      %p102 = por %p100, %p101
      %p103 = scmp.ne.s32.totalorder %s95, %s97
      %p104 = scmp.eq.s32.totalorder %s24, 1
      %p105 = por %p103, %p104
      %p106 = scmp.ne.s32.totalorder %s97, %s98
      %p107 = scmp.eq.s32.totalorder %s24, 0
      %p108 = por %p106, %p107
      %p109 = scmp.ne.s32.totalorder %s97, %s98
      %p110 = scmp.eq.s32.totalorder %s25, 1
      %p111 = por %p109, %p110
      %p113 = scmp.ne.s32.totalorder %s98, %s112
      %p114 = scmp.eq.s32.totalorder %s25, 0
      %p115 = por %p113, %p114
      %s117 = sadd.s32 %s116, 1
      %p120 = scmp.eq.s32.totalorder %s19, 1
      %p121 = scmp.ne.s32.totalorder %s116, %s118
      %p122 = scmp.eq.s32.totalorder %s19, 0
      %p123 = por %p121, %p122
      %p124 = scmp.ne.s32.totalorder %s116, %s118
      %p125 = scmp.eq.s32.totalorder %s24, 1
      %p126 = por %p124, %p125
      %p127 = scmp.ne.s32.totalorder %s118, %s119
      %p128 = scmp.eq.s32.totalorder %s24, 0
      %p129 = por %p127, %p128
      %p130 = scmp.ne.s32.totalorder %s118, %s119
      %p131 = scmp.eq.s32.totalorder %s25, 1
      %p132 = por %p130, %p131
      %p134 = scmp.ne.s32.totalorder %s119, %s133
      %p135 = scmp.eq.s32.totalorder %s25, 0
      %p136 = por %p134, %p135
      %s137 = ssub.s32 %s19, %s26
      %p138 = scmp.eq.s32.totalorder %s137, 0
      %s140 = sadd.s32 %s139, 1
      %s141 = scalar_select %p138, %s139, %s140
      %p144 = pneg %p138
      %p145 = scmp.eq.s32.totalorder %s19, 1
      %p146 = por %p144, %p145
      %p147 = scmp.ne.s32.totalorder %s139, %s142
      %p148 = scmp.eq.s32.totalorder %s19, 0
      %p149 = por %p147, %p148
      %p150 = scmp.ne.s32.totalorder %s139, %s142
      %p151 = scmp.eq.s32.totalorder %s24, 1
      %p152 = por %p150, %p151
      %p153 = scmp.ne.s32.totalorder %s142, %s143
      %p154 = scmp.eq.s32.totalorder %s24, 0
      %p155 = por %p153, %p154
      %p156 = scmp.ne.s32.totalorder %s142, %s143
      %p157 = scmp.eq.s32.totalorder %s25, 1
      %p158 = por %p156, %p157
      %p160 = scmp.ne.s32.totalorder %s143, %s159
      %p161 = scmp.eq.s32.totalorder %s25, 0
      %p162 = por %p160, %p161
      %p163 = scmp.le.s32.totalorder 1, %s19
      %p164 = scmp.lt.s32.totalorder %s19, 3
      %p165 = pnand %p163, %p164
      %p166 = pneg %p165
      // Predicated region
      $region9: #{tpu_custom_call.1} parent=5 // pred_check
        _
      $region10: #{tpu_custom_call.1} parent=5 // pred_check_branch
        %168 = sbr.rel (%p165) target = $region12
      $region11: #{tpu_custom_call.1} parent=5 // pred_region
        %s169 = ssub.s32 %s19, 1
        // Predicated region
        $region13: #{tpu_custom_call.1} parent=11 // pred_check
          %p170 = pneg %p66
        $region14: #{tpu_custom_call.1} parent=11 // pred_check_branch
          %172 = sbr.rel (%p170) target = $region16
        $region15: #{tpu_custom_call.1} parent=11 // pred_region
          %174 = vsyncadd [#allocation6], 0
          %s175 = sshll.u32 %s1, 4
          %s176 = int_to_ptr.hbm [resolvable:$true] %s175
          %s177 = sshll.u32 [#allocation5], 4
          %s178 = int_to_ptr.vmem [resolvable:$true] %s177
          %183 = dma.hbm_to_vmem [thread:$0]  %s176, 2048, %s178, [#allocation6], 128, 128, 8
        $region16: #{tpu_custom_call.1} parent=11 // pred_fallthru
          _
        // Predicated region
        $region17: #{tpu_custom_call.1} parent=11 // pred_check
          %p184 = pneg %p87
        $region18: #{tpu_custom_call.1} parent=11 // pred_check_branch
          %186 = sbr.rel (%p184) target = $region20
        $region19: #{tpu_custom_call.1} parent=11 // pred_region
          _
        $region20: #{tpu_custom_call.1} parent=11 // pred_fallthru
          _
        // Predicated region
        $region21: #{tpu_custom_call.1} parent=11 // pred_check
          %p187 = pneg %p108
        $region22: #{tpu_custom_call.1} parent=11 // pred_check_branch
          %189 = sbr.rel (%p187) target = $region24
        $region23: #{tpu_custom_call.1} parent=11 // pred_region
          %191 = vsyncadd [#allocation6], 0
          %s192 = sshll.u32 %s3, 4
          %s193 = int_to_ptr.hbm [resolvable:$true] %s192
          %s194 = sshll.u32 [#allocation7], 4
          %s195 = int_to_ptr.vmem [resolvable:$true] %s194
          %200 = dma.hbm_to_vmem [thread:$0]  %s193, 2048, %s195, [#allocation6], 128, 128, 8
        $region24: #{tpu_custom_call.1} parent=11 // pred_fallthru
          _
        // Predicated region
        $region25: #{tpu_custom_call.1} parent=11 // pred_check
          %p201 = pneg %p129
        $region26: #{tpu_custom_call.1} parent=11 // pred_check_branch
          %203 = sbr.rel (%p201) target = $region28
        $region27: #{tpu_custom_call.1} parent=11 // pred_region
          %205 = vsyncadd [#allocation9], 0
          %s207 = sshll.u32 %s4, 4
          %s208 = int_to_ptr.hbm [resolvable:$true] %s207
          %s209 = sshll.u32 [#allocation8], 4
          %s210 = int_to_ptr.vmem [resolvable:$true] %s209
          %212 = dma.hbm_to_vmem [thread:$0]  %s208, 64, %s210, [#allocation9]
        $region28: #{tpu_custom_call.1} parent=11 // pred_fallthru
          _
      $region12: #{tpu_custom_call.1} parent=5 // pred_fallthru
        _
      %p213 = scmp.lt.s32.totalorder %s19, 2
      // Predicated region
      $region29: #{tpu_custom_call.1} parent=5 // pred_check
        %p214 = pneg %p213
      $region30: #{tpu_custom_call.1} parent=5 // pred_check_branch
        %216 = sbr.rel (%p214) target = $region32
      $region31: #{tpu_custom_call.1} parent=5 // pred_region
        // Predicated region
        $region33: #{tpu_custom_call.1} parent=31 // pred_check
          %p217 = pneg %p39
        $region34: #{tpu_custom_call.1} parent=31 // pred_check_branch
          %219 = sbr.rel (%p217) target = $region36
        $region35: #{tpu_custom_call.1} parent=31 // pred_region
          %s220 = sand.u32 %s29, 1
          %s221 = scalar_lea.sflag [#allocation3], %s220
          %s222 = sand.u32 %s29, 1
          %s223 = smul.addr %s222, 8
          %s224 = scalar_lea.vmem [#allocation2], %s223
          %226 = vsyncadd %s221, 0
          %s227 = smul.addr %s19, 8
          %s228 = scalar_lea.hbm %s0, %s227
          %s230 = sshll.u32 %s228, 4
          %s231 = int_to_ptr.hbm [resolvable:$true] %s230
          %s232 = sshll.u32 %s224, 4
          %s233 = int_to_ptr.vmem [resolvable:$true] %s232
          %235 = dma.hbm_to_vmem [thread:$0]  %s231, 128, %s233, %s221
        $region36: #{tpu_custom_call.1} parent=31 // pred_fallthru
          _
      $region32: #{tpu_custom_call.1} parent=5 // pred_fallthru
        _
      %p236 = scmp.le.s32.totalorder 1, %s19
      %p237 = scmp.lt.s32.totalorder %s19, 3
      %p238 = pnand %p236, %p237
      %p239 = pneg %p238
      // Predicated region
      $region37: #{tpu_custom_call.1} parent=5 // pred_check
        _
      $region38: #{tpu_custom_call.1} parent=5 // pred_check_branch
        %241 = sbr.rel (%p238) target = $region40
      $region39: #{tpu_custom_call.1} parent=5 // pred_region
        %s242 = ssub.s32 %s19, 1
        %s243 = sand.u32 %s32, 1
        %s244 = scalar_lea.sflag [#allocation3], %s243
        %s245 = sand.u32 %s32, 1
        %s246 = smul.addr %s245, 8
        %s247 = scalar_lea.vmem [#allocation2], %s246
        // Predicated region
        $region41: #{tpu_custom_call.1} parent=39 // pred_check
          %p248 = pneg %p45
        $region42: #{tpu_custom_call.1} parent=39 // pred_check_branch
          %250 = sbr.rel (%p248) target = $region44
        $region43: #{tpu_custom_call.1} parent=39 // pred_region
          %252 = dma.done %s244, 128
        $region44: #{tpu_custom_call.1} parent=39 // pred_fallthru
          _
        // Predicated region
        $region45: #{tpu_custom_call.1} parent=39 // pred_check
          %p253 = pneg %p66
        $region46: #{tpu_custom_call.1} parent=39 // pred_check_branch
          %255 = sbr.rel (%p253) target = $region48
        $region47: #{tpu_custom_call.1} parent=39 // pred_region
          %257 = dma.done [#allocation6], 2048
        $region48: #{tpu_custom_call.1} parent=39 // pred_fallthru
          _
        // Predicated region
        $region49: #{tpu_custom_call.1} parent=39 // pred_check
          %p258 = pneg %p108
        $region50: #{tpu_custom_call.1} parent=39 // pred_check_branch
          %260 = sbr.rel (%p258) target = $region52
        $region51: #{tpu_custom_call.1} parent=39 // pred_region
          %262 = dma.done [#allocation6], 2048
        $region52: #{tpu_custom_call.1} parent=39 // pred_fallthru
          _
        // Predicated region
        $region53: #{tpu_custom_call.1} parent=39 // pred_check
          %p263 = pneg %p129
        $region54: #{tpu_custom_call.1} parent=39 // pred_check_branch
          %265 = sbr.rel (%p263) target = $region56
        $region55: #{tpu_custom_call.1} parent=39 // pred_region
          %267 = dma.done [#allocation9], 64
        $region56: #{tpu_custom_call.1} parent=39 // pred_fallthru
          _
        %s268 = sand.u32 %s32, 1
        %s269 = scalar_lea.sflag [#allocation3], %s268
        %s270 = sand.u32 %s32, 1
        %s271 = smul.addr %s270, 8
        %s272 = scalar_lea.vmem [#allocation2], %s271
        %p273 = pneg %p45
        %p274 = pneg %p42
        %p275 = pneg %p66
        %p276 = pneg %p63
        %p277 = pneg %p87
        %p278 = pneg %p84
        %p279 = pneg %p108
        %p280 = pneg %p105
        %p281 = pneg %p129
        %p282 = pneg %p126
        %p283 = pneg %p155
        %p284 = pneg %p152
        %s285 = sand.u32 %s142, 1
        %s286 = scalar_lea.sflag [#allocation4], %s285
        %s287 = sand.u32 %s142, 1
        %s288 = smul.addr %s287, 8
        %s289 = scalar_lea.vmem [#allocation10], %s288
        %v290 = vld [vmem:[%s247] sm:$0xff]
        %v291 = vld [vmem:[#allocation5] sm:$0xff]
        %v292 = vld [vmem:[#allocation5 + $0x8] sm:$0xff]
        %v293 = vld [vmem:[#allocation5 + $0x10] sm:$0xff]
        %v294 = vld [vmem:[#allocation5 + $0x18] sm:$0xff]
        %v295 = vld [vmem:[#allocation5 + $0x20] sm:$0xff]
        %v296 = vld [vmem:[#allocation5 + $0x28] sm:$0xff]
        %v297 = vld [vmem:[#allocation5 + $0x30] sm:$0xff]
        %v298 = vld [vmem:[#allocation5 + $0x38] sm:$0xff]
        %v299 = vld [vmem:[#allocation5 + $0x40] sm:$0xff]
        %v300 = vld [vmem:[#allocation5 + $0x48] sm:$0xff]
        %v301 = vld [vmem:[#allocation5 + $0x50] sm:$0xff]
        %v302 = vld [vmem:[#allocation5 + $0x58] sm:$0xff]
        %v303 = vld [vmem:[#allocation5 + $0x60] sm:$0xff]
        %v304 = vld [vmem:[#allocation5 + $0x68] sm:$0xff]
        %v305 = vld [vmem:[#allocation5 + $0x70] sm:$0xff]
        %v306 = vld [vmem:[#allocation5 + $0x78] sm:$0xff]
        %v307 = vld [vmem:[%s2] sm:$0x1]
        %v309 = vperm.slane %v307, 0
        %311 = vmatpush.msra.mxu0 %v306
        %312 = vmatpush.msra.mxu0 %v305
        %313 = vmatpush.msra.mxu0 %v304
        %314 = vmatpush.msra.mxu0 %v303
        %315 = vmatpush.msra.mxu0 %v302
        %316 = vmatpush.msra.mxu0 %v301
        %317 = vmatpush.msra.mxu0 %v300
        %318 = vmatpush.msra.mxu0 %v299
        %319 = vmatpush.msra.mxu0 %v298
        %320 = vmatpush.msra.mxu0 %v297
        %321 = vmatpush.msra.mxu0 %v296
        %322 = vmatpush.msra.mxu0 %v295
        %323 = vmatpush.msra.mxu0 %v294
        %324 = vmatpush.msra.mxu0 %v293
        %325 = vmatpush.msra.mxu0 %v292
        %326 = vmatpush.msra.mxu0 %v291
        %327 = vmatmul.f32.gmra.mxu0 %v290
        %v328 = vpop.f32.mrf.mxu0
        %v329 = vadd.f32 %v309, %v328
        %330 = vdwg.mxu0
        %v331 = vmax.f32 %v329, 0.0
        %v332 = vld [vmem:[#allocation7] sm:$0xff]
        %v333 = vld [vmem:[#allocation7 + $0x8] sm:$0xff]
        %v334 = vld [vmem:[#allocation7 + $0x10] sm:$0xff]
        %v335 = vld [vmem:[#allocation7 + $0x18] sm:$0xff]
        %v336 = vld [vmem:[#allocation7 + $0x20] sm:$0xff]
        %v337 = vld [vmem:[#allocation7 + $0x28] sm:$0xff]
        %v338 = vld [vmem:[#allocation7 + $0x30] sm:$0xff]
        %v339 = vld [vmem:[#allocation7 + $0x38] sm:$0xff]
        %v340 = vld [vmem:[#allocation7 + $0x40] sm:$0xff]
        %v341 = vld [vmem:[#allocation7 + $0x48] sm:$0xff]
        %v342 = vld [vmem:[#allocation7 + $0x50] sm:$0xff]
        %v343 = vld [vmem:[#allocation7 + $0x58] sm:$0xff]
        %v344 = vld [vmem:[#allocation7 + $0x60] sm:$0xff]
        %v345 = vld [vmem:[#allocation7 + $0x68] sm:$0xff]
        %v346 = vld [vmem:[#allocation7 + $0x70] sm:$0xff]
        %v347 = vld [vmem:[#allocation7 + $0x78] sm:$0xff]
        %v348 = vld [vmem:[#allocation8] sm:$0x7]
        %v349 = vperm.slane %v348, 0
        %350 = vmatpush.msra.mxu0 %v347
        %351 = vmatpush.msra.mxu0 %v346
        %352 = vmatpush.msra.mxu0 %v345
        %353 = vmatpush.msra.mxu0 %v344
        %354 = vmatpush.msra.mxu0 %v343
        %355 = vmatpush.msra.mxu0 %v342
        %356 = vmatpush.msra.mxu0 %v341
        %357 = vmatpush.msra.mxu0 %v340
        %358 = vmatpush.msra.mxu0 %v339
        %359 = vmatpush.msra.mxu0 %v338
        %360 = vmatpush.msra.mxu0 %v337
        %361 = vmatpush.msra.mxu0 %v336
        %362 = vmatpush.msra.mxu0 %v335
        %363 = vmatpush.msra.mxu0 %v334
        %364 = vmatpush.msra.mxu0 %v333
        %365 = vmatpush.msra.mxu0 %v332
        %366 = vmatmul.f32.gmra.mxu0 %v331
        %v367 = vpop.f32.mrf.mxu0
        %v368 = vadd.f32 %v349, %v367
        %369 = vdwg.mxu0
        %v370 = vadd.f32 %v368, %v290
        %371 = vadd.xlane.f32.xlu0 %v370
        %v372 = vpop.xlane.xlu0 %371
        %v373 = vmul.f32 %v372, 0.03125
        %v374 = vsub.f32 %v370, %v373
        %v375 = vlaneseq
        %v376 = vand.u32 %v375, 127
        %vm377 = vcmp.lt.s32.totalorder %v376, 32
        %v378 = vsel %vm377, %v374, 0.0
        %v379 = vmul.f32 %v378, %v378
        %380 = vadd.xlane.f32.xlu0 %v379
        %v381 = vpop.xlane.xlu0 %380
        %v382 = vmul.f32 %v381, 0.03125
        %v383 = vadd.f32 %v382, 1e-05
        %v384 = vrsqrt.pop %v383
        %v385 = vmul.f32 %v384, %v383
        %v386 = vmul.f32 %v385, %v384
        %v387 = vmul.f32 0.5, %v386
        %v388 = vsub.f32 1.5, %v387
        %v389 = vmul.f32 %v384, %v388
        %vm390 = vweird.f32 %v383
        %vm391 = vweird.f32 %v384
        %vm392 = vmor %vm390, %vm391
        %v393 = vsel %vm392, %v384, %v389
        %v394 = vperm.slane %v348, 1
        %v395 = vmul.f32 %v393, %v394
        %v396 = vmul.f32 %v378, %v395
        %v397 = vperm.slane %v348, 2
        %v398 = vadd.f32 %v396, %v397
        %399 = vst [vmem:[%s289] sm:$0xff] %v398
        %s400 = sand.u32 %s142, 1
        %s401 = scalar_lea.sflag [#allocation4], %s400
        %s402 = sand.u32 %s142, 1
        %s403 = smul.addr %s402, 8
        %s404 = scalar_lea.vmem [#allocation10], %s403
        // Predicated region
        $region57: #{tpu_custom_call.1} parent=39 // pred_check
          %p405 = pneg %p152
        $region58: #{tpu_custom_call.1} parent=39 // pred_check_branch
          %407 = sbr.rel (%p405) target = $region60
        $region59: #{tpu_custom_call.1} parent=39 // pred_region
          %409 = vsyncadd %s401, 0
          %s410 = smul.addr %s24, 8
          %s411 = scalar_lea.hbm %s5, %s410
          %s413 = sshll.u32 %s404, 4
          %s414 = int_to_ptr.vmem [resolvable:$true] %s413
          %s415 = sshll.u32 %s411, 4
          %s416 = int_to_ptr.hbm [resolvable:$true] %s415
          %418 = dma.vmem_to_hbm [thread:$0]  %s414, 128, %s416, %s401
        $region60: #{tpu_custom_call.1} parent=39 // pred_fallthru
          _
      $region40: #{tpu_custom_call.1} parent=5 // pred_fallthru
        _
      %p419 = scmp.le.s32.totalorder 2, %s19
      // Predicated region
      $region61: #{tpu_custom_call.1} parent=5 // pred_check
        %p420 = pneg %p419
      $region62: #{tpu_custom_call.1} parent=5 // pred_check_branch
        %422 = sbr.rel (%p420) target = $region64
      $region63: #{tpu_custom_call.1} parent=5 // pred_region
        %s423 = ssub.s32 %s19, 2
        // Predicated region
        $region65: #{tpu_custom_call.1} parent=63 // pred_check
          %p424 = pneg %p158
        $region66: #{tpu_custom_call.1} parent=63 // pred_check_branch
          %426 = sbr.rel (%p424) target = $region68
        $region67: #{tpu_custom_call.1} parent=63 // pred_region
          %s427 = sand.u32 %s143, 1
          %s428 = scalar_lea.sflag [#allocation4], %s427
          %s429 = sand.u32 %s143, 1
          %s430 = smul.addr %s429, 8
          %s431 = scalar_lea.vmem [#allocation10], %s430
          %433 = dma.done %s428, 128
        $region68: #{tpu_custom_call.1} parent=63 // pred_fallthru
          _
      $region64: #{tpu_custom_call.1} parent=5 // pred_fallthru
        _
    $region6: #{tpu_custom_call.1} parent=1 // loop_footer
      %s23 = sadd.s32 1, %s19
    $region7: #{tpu_custom_call.1} parent=1 // loop_footer_branch
      %18 = sbr.rel target = $region3
    $region8: #{tpu_custom_call.1} parent=1 // loop_exit
      _
    %434 = vsyncpa [#allocation3], 1
    %s435 = scalar_lea.sflag [#allocation3], 1
    %436 = vsyncpa %s435, 1
    %437 = vsyncpa [#allocation6], 1
    %438 = vsyncpa [#allocation9], 1
    %439 = vsyncpa [#allocation4], 1
    %s440 = scalar_lea.sflag [#allocation4], 1
    %441 = vsyncpa %s440, 1

</llo_original>
